<compile_context>
chip_gen: v7x
topology: tpu7x:2x2x1
jax: 0.10.0
libtpu: 0.0.40
codegen_flags: <defaults>
</compile_context>

<pallas_src>
import math

import jax
import jax.numpy as jnp
from jax.experimental import pallas as pl
from jax.experimental.pallas import tpu as pltpu


def _round_up(x, n):
    return ((x + n - 1) // n) * n


def _cdiv(a, b):
    return (a + b - 1) // b


def _compiler_params(sem, vmem_bytes):
    # Clamp: floor 32 MiB (above v5e's 16 MiB scoped default), cap 48 MiB
    # (comfortably inside v7x's 64 MiB physical VMEM).
    return pltpu.CompilerParams(
        dimension_semantics=sem,
        vmem_limit_bytes=int(min(max(vmem_bytes, 32 << 20), 48 << 20)))


# ---------------------------------------------------------------------------
# Pass 1: normalized embeddings (bf16), target logit, margin terms.
# ---------------------------------------------------------------------------
def _make_prepass_kernel(m):
    cos_m = math.cos(m)
    sin_m = math.sin(m)
    threshold = math.cos(math.pi - m)
    mm = math.sin(math.pi - m) * m

    def kernel(x_ref, wr_ref, embn_ref, ctm_ref, ft_ref, tgt_ref):
        x = x_ref[...]                                               # (tb, D) f32
        x_n = x * jax.lax.rsqrt(
            jnp.maximum(jnp.sum(x * x, axis=1, keepdims=True), 1e-30))

        wr = wr_ref[...]                                             # (tb, D) gathered label cols
        wr_n = wr * jax.lax.rsqrt(
            jnp.maximum(jnp.sum(wr * wr, axis=1, keepdims=True), 1e-30))

        # target_logit = cos(theta) for each row's own class, clipped like the ref.
        target = jnp.clip(jnp.sum(x_n * wr_n, axis=1, keepdims=True), -1.0, 1.0)

        sin_t = jnp.sqrt(jnp.maximum(1.0 - target * target, 0.0))    # guard tiny negatives
        ctm = target * cos_m - sin_t * sin_m                         # cos(theta + m)
        ft = jnp.where(target > threshold, ctm, target - mm)         # final_target_logit

        embn_ref[...] = x_n.astype(jnp.bfloat16)                     # hoisted bf16 cast
        ctm_ref[...] = ctm
        ft_ref[...] = ft
        tgt_ref[...] = target                                        # for t-buffer update

    return kernel


# ---------------------------------------------------------------------------
# Pass 2: tiled margined-cosine logits + online log-sum-exp loss.
# ---------------------------------------------------------------------------
def _make_main_kernel(*, num_classes, tc, s_over_tau, mask_padding):
    def kernel(emb_ref, w_ref, lab_ref, mft_ref, loss_ref, m_scr, l_scr):
        j = pl.program_id(1)

        @pl.when(j == 0)
        def _():
            m_scr[...] = jnp.full_like(m_scr, -jnp.inf)
            l_scr[...] = jnp.zeros_like(l_scr)

        # Column L2 norm of this weight tile, computed in f32 but applied to
        # the (tb, tc) matmul output (tb*tc scale ops instead of D*tc), so the
        # MXU consumes the raw bf16 tile.
        w = w_ref[...]                                               # (D, tc) f32
        inv_wn = jax.lax.rsqrt(
            jnp.maximum(jnp.sum(w * w, axis=0, keepdims=True), 1e-30))   # (1, tc)

        cos = jnp.dot(emb_ref[...], w.astype(jnp.bfloat16),
                      preferred_element_type=jnp.float32) * inv_wn   # (tb, tc) f32
        cos = jnp.clip(cos, -1.0, 1.0)

        mft = mft_ref[...]                                           # (tb, 3) packed
        ctm = mft[:, 0:1]                                            # cos(theta+m)
        ft = mft[:, 1:2]                                             # final_target_logit
        t = mft[:, 2:3]                                              # updated t (broadcast)

        # CurricularFace hard-example reweighting: cos > cos(theta+m) -> cos*(t+cos)
        cos = jnp.where(cos > ctm, cos * (t + cos), cos)

        # Scatter final_target into each row's label column (hits exactly one tile).
        col = jax.lax.broadcasted_iota(jnp.int32, cos.shape, 1) + j * tc
        cos = jnp.where(col == lab_ref[...], ft, cos)

        # Margined logits already divided by tau (s/tau folded into one constant).
        if mask_padding:
            logits = jnp.where(col < num_classes, cos * s_over_tau, -jnp.inf)
        else:
            logits = cos * s_over_tau

        # Online log-sum-exp across the class tiles.  Every class tile holds at
        # least one real column (C_pad - C < tc), so a whole-tile -inf (which
        # would give exp(-inf - -inf) = NaN on the first tile) cannot occur.
        # (If the EUP ever saturates at large tiles, the exp below could be
        #  done in bf16 on v6e/v7x.)
        m_prev = m_scr[...]
        m_cur = jnp.maximum(m_prev, jnp.max(logits, axis=1, keepdims=True))
        l_scr[...] = (l_scr[...] * jnp.exp(m_prev - m_cur)
                      + jnp.sum(jnp.exp(logits - m_cur), axis=1, keepdims=True))
        m_scr[...] = m_cur

        @pl.when(j == pl.num_programs(1) - 1)
        def _():
            # loss_i = -log(exp(ft*s/tau) / sum_c exp(logit_c)) = lse - ft*s/tau
            # (the reference's eps=1e-10 is negligible at this scale and would
            #  not rescue the reference's float32 inf/inf overflow anyway)
            loss_ref[...] = m_scr[...] + jnp.log(l_scr[...]) - ft * s_over_tau

    return kernel


# ---------------------------------------------------------------------------
# Wrapper.
# ---------------------------------------------------------------------------
def classification_loss(dq_g, labels, weight, t_prev, *,
                        tau=0.05, s=64.0, m=0.5, tb=None, tc=None):
    """Returns (mean loss, updated CurricularFace `t` buffer)."""
    B, D = dq_g.shape
    C = weight.shape[1]

    x = dq_g.astype(jnp.float32)
    w = weight.astype(jnp.float32)
    labels = labels.astype(jnp.int32)
    t_prev = jnp.asarray(t_prev, jnp.float32).reshape(-1)[0]

    # ---- tile selection --------------------------------------------------
    # Batch tile: as large as the VMEM budget allows (nb -> 1) so the dominant
    # (D, C) weight stream is read from HBM exactly once, not once per batch
    # tile.  Capped by D so both passes stay inside ~48 MiB of VMEM.
    if tb is None:
        tb_cap = max(16, min(512, (1_500_000 // max(D, 1)) // 16 * 16))
        nb = max(1, _cdiv(B, tb_cap))
        tb = _round_up(_cdiv(B, nb), 16)
    else:
        tb = _round_up(tb, 16)
        nb = _cdiv(B, tb)
    B_pad = nb * tb

    # Class tile: large & lane-dense to amortize the per-grid-step overhead,
    # capped so the double-buffered (D, tc) f32 weight tile stays <= ~16 MiB.
    if tc is None:
        tc_cap = max(128, (2_097_152 // max(D, 1)) // 128 * 128)
        tc = min(_round_up(C, 128), min(1024, tc_cap))
    else:
        tc = _round_up(tc, 128)
    C_pad = _round_up(C, tc)
    nc = C_pad // tc

    # ---- pass 1 ------------------------------------------------------------
    # TODO(synk): the label-column gather could be pulled into the kernel with
    # scalar-prefetch + pl.Element blocks; it is only O(B*D) so XLA does it.
    w_rows = jnp.take(w, labels, axis=1).T                          # (B, D)

    x_p = jnp.pad(x, ((0, B_pad - B), (0, 0)))
    wr_p = jnp.pad(w_rows, ((0, B_pad - B), (0, 0)))

    vmem1 = 32 * tb * D + (2 << 20)
    emb_n, ctm, ft, target = pl.pallas_call(
        _make_prepass_kernel(m),
        out_shape=(
            jax.ShapeDtypeStruct((B_pad, D), jnp.bfloat16),          # normalized emb (bf16)
            jax.ShapeDtypeStruct((B_pad, 1), jnp.float32),           # cos(theta+m)
            jax.ShapeDtypeStruct((B_pad, 1), jnp.float32),           # final_target
            jax.ShapeDtypeStruct((B_pad, 1), jnp.float32),           # target logit
        ),
        grid=(nb,),
        in_specs=[
            pl.BlockSpec((tb, D), lambda i: (i, 0)),                 # x
            pl.BlockSpec((tb, D), lambda i: (i, 0)),                 # gathered label cols
        ],
        out_specs=(
            pl.BlockSpec((tb, D), lambda i: (i, 0)),
            pl.BlockSpec((tb, 1), lambda i: (i, 0)),
            pl.BlockSpec((tb, 1), lambda i: (i, 0)),
            pl.BlockSpec((tb, 1), lambda i: (i, 0)),
        ),
        compiler_params=_compiler_params(("parallel",), vmem1),
    )(x_p, wr_p)

    # CurricularFace running buffer: updated with the OLD t (as in PyTorch),
    # pass 2 then reweights with the UPDATED t (also as in PyTorch).  Tiny XLA
    # reduction over B scalars.
    t_new = 0.01 * jnp.mean(target[:B, 0]) + 0.99 * t_prev

    # ---- pass 2 ------------------------------------------------------------
    w_p = jnp.pad(w, ((0, 0), (0, C_pad - C)))
    lab_p = jnp.pad(labels.reshape(B, 1), ((0, B_pad - B), (0, 0)),
                    constant_values=-1)
    # Pack [ctm, ft, t] into one narrow stream (avoids a separate (B_pad,1)
    # broadcast array / extra narrow DMA stream for t).
    mft = jnp.concatenate(
        [ctm, ft, jnp.broadcast_to(t_new, (B_pad, 1))], axis=1)     # (B_pad, 3)

    kernel = _make_main_kernel(num_classes=C, tc=tc, s_over_tau=s / tau,
                               mask_padding=(C_pad != C))

    vmem2 = (3 * D * tc * 4      # double-buffered weight + norm temp
             + 2 * tb * D * 2    # double-buffered bf16 emb tile
             + 6 * tb * tc * 4   # (tb, tc) intermediates
             + (2 << 20))

    # TODO(synk): when nb == 1 on a 2-TensorCore chip (v7x), the class axis
    # could be split across cores with per-core (m, l) partials combined in a
    # tiny epilogue to use both cores without duplicating the weight stream.
    loss_rows = pl.pallas_call(
        kernel,
        out_shape=jax.ShapeDtypeStruct((B_pad, 1), jnp.float32),
        grid_spec=pltpu.PrefetchScalarGridSpec(
            num_scalar_prefetch=0,
            grid=(nb, nc),
            in_specs=[
                pl.BlockSpec((tb, D), lambda i, j: (i, 0)),          # emb_n (bf16)
                pl.BlockSpec((D, tc), lambda i, j: (0, j)),          # weight tile
                pl.BlockSpec((tb, 1), lambda i, j: (i, 0)),          # labels
                pl.BlockSpec((tb, 3), lambda i, j: (i, 0)),          # packed [ctm, ft, t]
            ],
            out_specs=pl.BlockSpec((tb, 1), lambda i, j: (i, 0)),
            scratch_shapes=[
                pltpu.VMEM((tb, 1), jnp.float32),                    # running max
                pltpu.VMEM((tb, 1), jnp.float32),                    # running sum of exp
            ],
        ),
        compiler_params=_compiler_params(("parallel", "arbitrary"), vmem2),
    )(emb_n, w_p, lab_p, mft)

    loss = jnp.mean(loss_rows[:B, 0])
    return loss, t_new.reshape(1)


if __name__ == "__main__":
    # Small deterministic example (feature_dim / num_classes scaled down).
    B, D, C = 16, 256, 1024
    key = jax.random.PRNGKey(0)
    k_x, k_w, k_l = jax.random.split(key, 3)

    dq_g = jax.random.normal(k_x, (B, D), dtype=jnp.float32)
    # CurricularFace kernel init: normal_(std=0.01), shape (in_features, out_features)
    weight = 0.01 * jax.random.normal(k_w, (D, C), dtype=jnp.float32)
    labels = jax.random.randint(k_l, (B,), 0, C, dtype=jnp.int32)
    t_prev = jnp.zeros((1,), dtype=jnp.float32)     # register_buffer('t', torch.zeros(1))

    loss, t_new = classification_loss(dq_g, labels, weight, t_prev,
                                      tau=0.05, s=64.0, m=0.5)
    jax.block_until_ready((loss, t_new))
    print("KERNEL_OK")
</pallas_src>

<mosaic_0001>
module attributes {stable_mosaic.version = 11 : i64} {
  func.func @kernel(%arg0: i32, %arg1: memref<16x256xf32, #tpu.memory_space<vmem>>, %arg2: memref<16x256xf32, #tpu.memory_space<vmem>>, %arg3: memref<16x256xbf16, #tpu.memory_space<vmem>>, %arg4: memref<16x1xf32, #tpu.memory_space<vmem>>, %arg5: memref<16x1xf32, #tpu.memory_space<vmem>>, %arg6: memref<16x1xf32, #tpu.memory_space<vmem>>) attributes {dimension_semantics = [#tpu.dimension_semantics<parallel>], iteration_bounds = array<i64: 1>, scalar_prefetch = 0 : i64, scratch_operands = 0 : i64, tpu.core_type = #tpu.core_type<tc>, window_params = [{transform_indices = @transform_0, window_bounds = array<i64: 16, 256>}, {transform_indices = @transform_1, window_bounds = array<i64: 16, 256>}, {transform_indices = @transform_2, window_bounds = array<i64: 16, 256>}, {transform_indices = @transform_3, window_bounds = array<i64: 16, 1>}, {transform_indices = @transform_4, window_bounds = array<i64: 16, 1>}, {transform_indices = @transform_5, window_bounds = array<i64: 16, 1>}]} {
    %c0 = arith.constant 0 : index
    %c0_0 = arith.constant 0 : index
    %0 = vector.load %arg1[%c0, %c0_0] : memref<16x256xf32, #tpu.memory_space<vmem>>, vector<16x256xf32>
    %1 = arith.mulf %0, %0 : vector<16x256xf32>
    %cst = arith.constant dense<0.000000e+00> : vector<16xf32>
    %2 = vector.multi_reduction <add>, %1, %cst [1] : vector<16x256xf32> to vector<16xf32>
    %3 = vector.shape_cast %2 : vector<16xf32> to vector<16x1xf32>
    %cst_1 = arith.constant 1.000000e-30 : f32
    %4 = vector.broadcast %cst_1 : f32 to vector<16x1xf32>
    %5 = arith.maximumf %3, %4 : vector<16x1xf32>
    %6 = math.rsqrt %5 : vector<16x1xf32>
    %7 = vector.broadcast %6 : vector<16x1xf32> to vector<16x256xf32>
    %8 = arith.mulf %0, %7 : vector<16x256xf32>
    %c0_2 = arith.constant 0 : index
    %c0_3 = arith.constant 0 : index
    %9 = vector.load %arg2[%c0_2, %c0_3] : memref<16x256xf32, #tpu.memory_space<vmem>>, vector<16x256xf32>
    %10 = arith.mulf %9, %9 : vector<16x256xf32>
    %cst_4 = arith.constant dense<0.000000e+00> : vector<16xf32>
    %11 = vector.multi_reduction <add>, %10, %cst_4 [1] : vector<16x256xf32> to vector<16xf32>
    %12 = vector.shape_cast %11 : vector<16xf32> to vector<16x1xf32>
    %cst_5 = arith.constant 1.000000e-30 : f32
    %13 = vector.broadcast %cst_5 : f32 to vector<16x1xf32>
    %14 = arith.maximumf %12, %13 : vector<16x1xf32>
    %15 = math.rsqrt %14 : vector<16x1xf32>
    %16 = vector.broadcast %15 : vector<16x1xf32> to vector<16x256xf32>
    %17 = arith.mulf %9, %16 : vector<16x256xf32>
    %18 = arith.mulf %8, %17 : vector<16x256xf32>
    %cst_6 = arith.constant dense<0.000000e+00> : vector<16xf32>
    %19 = vector.multi_reduction <add>, %18, %cst_6 [1] : vector<16x256xf32> to vector<16xf32>
    %20 = vector.shape_cast %19 : vector<16xf32> to vector<16x1xf32>
    %cst_7 = arith.constant -1.000000e+00 : f32
    %cst_8 = arith.constant 1.000000e+00 : f32
    %21 = vector.broadcast %cst_7 : f32 to vector<16x1xf32>
    %22 = arith.maximumf %21, %20 : vector<16x1xf32>
    %23 = vector.broadcast %cst_8 : f32 to vector<16x1xf32>
    %24 = arith.minimumf %23, %22 : vector<16x1xf32>
    %25 = arith.mulf %24, %24 : vector<16x1xf32>
    %cst_9 = arith.constant 1.000000e+00 : f32
    %26 = vector.broadcast %cst_9 : f32 to vector<16x1xf32>
    %27 = arith.subf %26, %25 : vector<16x1xf32>
    %cst_10 = arith.constant 0.000000e+00 : f32
    %28 = vector.broadcast %cst_10 : f32 to vector<16x1xf32>
    %29 = arith.maximumf %27, %28 : vector<16x1xf32>
    %30 = math.sqrt %29 : vector<16x1xf32>
    %cst_11 = arith.constant 0.87758255 : f32
    %31 = vector.broadcast %cst_11 : f32 to vector<16x1xf32>
    %32 = arith.mulf %24, %31 : vector<16x1xf32>
    %cst_12 = arith.constant 0.47942555 : f32
    %33 = vector.broadcast %cst_12 : f32 to vector<16x1xf32>
    %34 = arith.mulf %30, %33 : vector<16x1xf32>
    %35 = arith.subf %32, %34 : vector<16x1xf32>
    %cst_13 = arith.constant -0.87758255 : f32
    %36 = vector.broadcast %cst_13 : f32 to vector<16x1xf32>
    %37 = arith.cmpf ogt, %24, %36 : vector<16x1xf32>
    %cst_14 = arith.constant 0.239712775 : f32
    %38 = vector.broadcast %cst_14 : f32 to vector<16x1xf32>
    %39 = arith.subf %24, %38 : vector<16x1xf32>
    %40 = arith.select %37, %35, %39 : vector<16x1xi1>, vector<16x1xf32>
    %41 = arith.truncf %8 : vector<16x256xf32> to vector<16x256xbf16>
    %c0_15 = arith.constant 0 : index
    %c0_16 = arith.constant 0 : index
    %42 = vector.load %arg3[%c0_15, %c0_16] : memref<16x256xbf16, #tpu.memory_space<vmem>>, vector<16x256xbf16>
    tpu.vector_store %arg3[%c0_15, %c0_16], %41 {strides = array<i32>} : memref<16x256xbf16, #tpu.memory_space<vmem>>, vector<16x256xbf16>,
    %c0_17 = arith.constant 0 : index
    %c0_18 = arith.constant 0 : index
    %43 = vector.load %arg4[%c0_17, %c0_18] : memref<16x1xf32, #tpu.memory_space<vmem>>, vector<16x1xf32>
    tpu.vector_store %arg4[%c0_17, %c0_18], %35 {strides = array<i32>} : memref<16x1xf32, #tpu.memory_space<vmem>>, vector<16x1xf32>,
    %c0_19 = arith.constant 0 : index
    %c0_20 = arith.constant 0 : index
    %44 = vector.load %arg5[%c0_19, %c0_20] : memref<16x1xf32, #tpu.memory_space<vmem>>, vector<16x1xf32>
    tpu.vector_store %arg5[%c0_19, %c0_20], %40 {strides = array<i32>} : memref<16x1xf32, #tpu.memory_space<vmem>>, vector<16x1xf32>,
    %c0_21 = arith.constant 0 : index
    %c0_22 = arith.constant 0 : index
    %45 = vector.load %arg6[%c0_21, %c0_22] : memref<16x1xf32, #tpu.memory_space<vmem>>, vector<16x1xf32>
    tpu.vector_store %arg6[%c0_21, %c0_22], %24 {strides = array<i32>} : memref<16x1xf32, #tpu.memory_space<vmem>>, vector<16x1xf32>,
    return
  }
  func.func @transform_0(%arg0: i32) -> (i32, i32) {
    %c0_i32 = arith.constant 0 : i32
    %c0_i32_0 = arith.constant 0 : i32
    return %arg0, %c0_i32 : i32, i32
  }
  func.func @transform_1(%arg0: i32) -> (i32, i32) {
    %c0_i32 = arith.constant 0 : i32
    %c0_i32_0 = arith.constant 0 : i32
    return %arg0, %c0_i32 : i32, i32
  }
  func.func @transform_2(%arg0: i32) -> (i32, i32) {
    %c0_i32 = arith.constant 0 : i32
    %c0_i32_0 = arith.constant 0 : i32
    return %arg0, %c0_i32 : i32, i32
  }
  func.func @transform_3(%arg0: i32) -> (i32, i32) {
    %c0_i32 = arith.constant 0 : i32
    %c0_i32_0 = arith.constant 0 : i32
    return %arg0, %c0_i32 : i32, i32
  }
  func.func @transform_4(%arg0: i32) -> (i32, i32) {
    %c0_i32 = arith.constant 0 : i32
    %c0_i32_0 = arith.constant 0 : i32
    return %arg0, %c0_i32 : i32, i32
  }
  func.func @transform_5(%arg0: i32) -> (i32, i32) {
    %c0_i32 = arith.constant 0 : i32
    %c0_i32_0 = arith.constant 0 : i32
    return %arg0, %c0_i32 : i32, i32
  }
}

</mosaic_0001>

<llo_original>
// kernel: tpu_custom_call.1
$region0: #{tpu_custom_call.1}
  #allocation0 [shape = 'u32[]', space=smem, size = 0x4, offset = 0x4, fixed_abs, tag = 'smem constant byte address 0x4 - core index']
  #allocation1 [shape = 'u32[144,128]{1,0:T(1,128)}', space=vmem, size = 0x12000, scoped, tag = 'internal scratch']
  %s0 = inlined_call_operand.hbm [shape: f32[16,256], index: 0, kind: input, shape index: {}]
  %s1 = inlined_call_operand.hbm [shape: f32[16,256], index: 1, kind: input, shape index: {}]
  %s2 = inlined_call_operand.hbm [shape: bf16[16,256], index: 2, kind: output, shape index: {0}]
  %s3 = inlined_call_operand.vmem [shape: f32[16,1], index: 3, kind: output, shape index: {1}]
  %s4 = inlined_call_operand.vmem [shape: f32[16,1], index: 4, kind: output, shape index: {2}]
  %s5 = inlined_call_operand.vmem [shape: f32[16,1], index: 5, kind: output, shape index: {3}]
  %6 = xla_tuple %s2, %s3, %s4, %s5
  %s7 = sld [smem:[#allocation0]]
  $region50: #{tpu_custom_call.1} parent=0
    _
  %s9 = ssub.s32 1, %s7
  %s10 = scalar_select 0, %s9, %s7
  $region1: #{tpu_custom_call.1} parent=0
    #allocation2 [shape = 'u8[16384]{0}', space=vmem, size = 0x4000, scoped, tag = 'input window, operand 0, single buffered']
    #allocation3 [shape = 's32[1]{0}', space=sflag, size = 0x4, scoped, tag = 'scoped memory for tpu_custom_call.1']
    #allocation4 [shape = 's32[1]{0}', space=sflag, size = 0x4, scoped, tag = 'scoped memory for tpu_custom_call.1']
    #allocation5 [shape = 'u8[16384]{0}', space=vmem, size = 0x4000, scoped, tag = 'input window, operand 1, single buffered']
    #allocation6 [shape = 's32[1]{0}', space=sflag, size = 0x4, scoped, tag = 'scoped memory for tpu_custom_call.1']
    #allocation7 [shape = 'u8[8192]{0}', space=vmem, size = 0x2000, scoped, tag = 'output window, operand 0, single buffered']
    %11 = vsyncpa [#allocation3], 0
    %12 = vsyncpa [#allocation6], 0
    %13 = vsyncpa [#allocation4], 0
    // Predicated region
    $region2: #{tpu_custom_call.1} parent=1 // pred_check
      _
    $region3: #{tpu_custom_call.1} parent=1 // pred_check_branch
      %15 = sbr.rel (0) target = $region5
    $region4: #{tpu_custom_call.1} parent=1 // pred_region
      %s17 = ssub.s32 512, 512
      %18 = vsyncadd [#allocation3], %s17
      %s19 = sshll.u32 [#allocation2], 4
      %s20 = int_to_ptr.vmem [resolvable:$true] %s19
      %25 = dma.hbm_to_vmem [thread:$0]  %s0, 512, %s20, [#allocation3], 256, 256, 16
    $region5: #{tpu_custom_call.1} parent=1 // pred_fallthru
      _
    // Predicated region
    $region6: #{tpu_custom_call.1} parent=1 // pred_check
      _
    $region7: #{tpu_custom_call.1} parent=1 // pred_check_branch
      %27 = sbr.rel (0) target = $region9
    $region8: #{tpu_custom_call.1} parent=1 // pred_region
      %s29 = ssub.s32 512, 512
      %30 = vsyncadd [#allocation6], %s29
      %s31 = sshll.u32 [#allocation5], 4
      %s32 = int_to_ptr.vmem [resolvable:$true] %s31
      %37 = dma.hbm_to_vmem [thread:$0]  %s1, 512, %s32, [#allocation6], 256, 256, 16
    $region9: #{tpu_custom_call.1} parent=1 // pred_fallthru
      _
    // Predicated region
    $region10: #{tpu_custom_call.1} parent=1 // pred_check
      _
    $region11: #{tpu_custom_call.1} parent=1 // pred_check_branch
      %39 = sbr.rel (0) target = $region13
    $region12: #{tpu_custom_call.1} parent=1 // pred_region
      %40 = dma.done [#allocation3], 512
    $region13: #{tpu_custom_call.1} parent=1 // pred_fallthru
      _
    // Predicated region
    $region14: #{tpu_custom_call.1} parent=1 // pred_check
      _
    $region15: #{tpu_custom_call.1} parent=1 // pred_check_branch
      %42 = sbr.rel (0) target = $region17
    $region16: #{tpu_custom_call.1} parent=1 // pred_region
      %43 = dma.done [#allocation6], 512
    $region17: #{tpu_custom_call.1} parent=1 // pred_fallthru
      _
    %v44 = vld [vmem:[#allocation2] sm:$0xff]
    %v45 = vld [vmem:[#allocation2 + $0x8] sm:$0xff]
    %v46 = vld [vmem:[#allocation2 + $0x10] sm:$0xff]
    %v47 = vld [vmem:[#allocation2 + $0x18] sm:$0xff]
    %v48 = vmul.f32 %v44, %v44
    %v49 = vmul.f32 %v45, %v45
    %v50 = vmul.f32 %v46, %v46
    %v51 = vmul.f32 %v47, %v47
    %v52 = vadd.f32 %v48, %v49
    %53 = vadd.xlane.f32.xlu0 %v52
    %v54 = vpop.xlane.xlu0 %53
    %v55 = vadd.f32 %v50, %v51
    %56 = vadd.xlane.f32.xlu0 %v55
    %v57 = vpop.xlane.xlu0 %56
    %v58 = vmax.f32 %v54, 1e-30
    %v59 = vmax.f32 %v57, 1e-30
    %v60 = vrsqrt.pop %v58
    %v61 = vrsqrt.pop %v59
    %v62 = vmul.f32 %v44, %v60
    %v63 = vmul.f32 %v45, %v60
    %v64 = vmul.f32 %v46, %v61
    %v65 = vmul.f32 %v47, %v61
    %v66 = vld [vmem:[#allocation5] sm:$0xff]
    %v67 = vld [vmem:[#allocation5 + $0x8] sm:$0xff]
    %v68 = vld [vmem:[#allocation5 + $0x10] sm:$0xff]
    %v69 = vld [vmem:[#allocation5 + $0x18] sm:$0xff]
    %v70 = vmul.f32 %v66, %v66
    %v71 = vmul.f32 %v67, %v67
    %v72 = vmul.f32 %v68, %v68
    %v73 = vmul.f32 %v69, %v69
    %v74 = vadd.f32 %v70, %v71
    %75 = vadd.xlane.f32.xlu0 %v74
    %v76 = vpop.xlane.xlu0 %75
    %v77 = vadd.f32 %v72, %v73
    %78 = vadd.xlane.f32.xlu0 %v77
    %v79 = vpop.xlane.xlu0 %78
    %v80 = vmax.f32 %v76, 1e-30
    %v81 = vmax.f32 %v79, 1e-30
    %v82 = vrsqrt.pop %v80
    %v83 = vrsqrt.pop %v81
    %v84 = vmul.f32 %v66, %v82
    %v85 = vmul.f32 %v67, %v82
    %v86 = vmul.f32 %v68, %v83
    %v87 = vmul.f32 %v69, %v83
    %v88 = vmul.f32 %v62, %v84
    %v89 = vmul.f32 %v63, %v85
    %v90 = vmul.f32 %v64, %v86
    %v91 = vmul.f32 %v65, %v87
    %v92 = vadd.f32 %v88, %v89
    %93 = vadd.xlane.f32.xlu0 %v92
    %v94 = vpop.xlane.xlu0 %93
    %v95 = vadd.f32 %v90, %v91
    %96 = vadd.xlane.f32.xlu0 %v95
    %v97 = vpop.xlane.xlu0 %96
    %v98 = vmax.f32 %v94, -1.0
    %v99 = vmax.f32 %v97, -1.0
    %v100 = vmin.f32 %v98, 1.0
    %v101 = vmin.f32 %v99, 1.0
    %v102 = vmul.f32 %v100, %v100
    %v103 = vmul.f32 %v101, %v101
    %v104 = vsub.f32 1.0, %v102
    %v105 = vsub.f32 1.0, %v103
    %v106 = vmax.f32 %v104, 0.0
    %v107 = vmax.f32 %v105, 0.0
    %v108 = vrsqrt.pop %v106
    %v109 = vmul.f32 %v106, %v108
    %vm110 = vcmp.eq.f32.partialorder %v106, inf
    %v111 = vsel %vm110, %v106, %v109
    %vm112 = vcmp.eq.f32.partialorder %v106, 0.0
    %v113 = vand.u32 %v106, 2147483648
    %v114 = vsel %vm112, %v113, %v111
    %v115 = vrsqrt.pop %v107
    %v116 = vmul.f32 %v107, %v115
    %vm117 = vcmp.eq.f32.partialorder %v107, inf
    %v118 = vsel %vm117, %v107, %v116
    %vm119 = vcmp.eq.f32.partialorder %v107, 0.0
    %v120 = vand.u32 %v107, 2147483648
    %v121 = vsel %vm119, %v120, %v118
    %v122 = vmul.f32 %v100, 0.87758255
    %v123 = vmul.f32 %v101, 0.87758255
    %v124 = vmul.f32 %v114, 0.47942555
    %v125 = vmul.f32 %v121, 0.47942555
    %v126 = vsub.f32 %v122, %v124
    %v127 = vsub.f32 %v123, %v125
    %vm128 = vcmp.gt.f32.partialorder %v100, -0.87758255
    %vm129 = vcmp.gt.f32.partialorder %v101, -0.87758255
    %v130 = vsub.f32 %v100, 0.23971277
    %v131 = vsub.f32 %v101, 0.23971277
    %v132 = vsel %vm128, %v126, %v130
    %v133 = vsel %vm129, %v127, %v131
    %v134 = vpack.c.bf16 %v64, %v62
    %v135 = vpack.c.bf16 %v65, %v63
    %v138 = vunpack.c.l.b16 %v134
    %v139 = vunpack.c.l.b16 %v135
    %v140 = vunpack.c.h.b16 %v134
    %v141 = vunpack.c.h.b16 %v135
    %v142 = vpack.c.b16 %v139, %v138
    %v143 = vpack.c.b16 %v141, %v140
    %146 = vst [vmem:[#allocation7] sm:$0xff] %v142
    %147 = vst [vmem:[#allocation7 + $0x8] sm:$0xff] %v143
    %vm148 = vcmask 7168
    %149 = vst.msk [vmem:[%s3] sm:$0xff] %vm148, %v126
    %150 = vst.msk [vmem:[%s3 + $0x8] sm:$0xff] %vm148, %v127
    %151 = vst.msk [vmem:[%s4] sm:$0xff] %vm148, %v132
    %152 = vst.msk [vmem:[%s4 + $0x8] sm:$0xff] %vm148, %v133
    %153 = vst.msk [vmem:[%s5] sm:$0xff] %vm148, %v100
    %154 = vst.msk [vmem:[%s5 + $0x8] sm:$0xff] %vm148, %v101
    // Predicated region
    $region18: #{tpu_custom_call.1} parent=1 // pred_check
      _
    $region19: #{tpu_custom_call.1} parent=1 // pred_check_branch
      %156 = sbr.rel (0) target = $region21
    $region20: #{tpu_custom_call.1} parent=1 // pred_region
      %s158 = ssub.s32 256, 256
      %159 = vsyncadd [#allocation4], %s158
      %s160 = sshll.u32 [#allocation7], 4
      %s161 = int_to_ptr.vmem [resolvable:$true] %s160
      %166 = dma.vmem_to_hbm [thread:$0]  %s161, 256, %s2, [#allocation4], 128, 128, 8
    $region21: #{tpu_custom_call.1} parent=1 // pred_fallthru
      _
    // Predicated region
    $region22: #{tpu_custom_call.1} parent=1 // pred_check
      _
    $region23: #{tpu_custom_call.1} parent=1 // pred_check_branch
      %168 = sbr.rel (0) target = $region25
    $region24: #{tpu_custom_call.1} parent=1 // pred_region
      _
    $region25: #{tpu_custom_call.1} parent=1 // pred_fallthru
      _
    // Predicated region
    $region26: #{tpu_custom_call.1} parent=1 // pred_check
      _
    $region27: #{tpu_custom_call.1} parent=1 // pred_check_branch
      %170 = sbr.rel (0) target = $region29
    $region28: #{tpu_custom_call.1} parent=1 // pred_region
      _
    $region29: #{tpu_custom_call.1} parent=1 // pred_fallthru
      _
    // Predicated region
    $region30: #{tpu_custom_call.1} parent=1 // pred_check
      _
    $region31: #{tpu_custom_call.1} parent=1 // pred_check_branch
      %172 = sbr.rel (0) target = $region33
    $region32: #{tpu_custom_call.1} parent=1 // pred_region
      _
    $region33: #{tpu_custom_call.1} parent=1 // pred_fallthru
      _
    // Predicated region
    $region34: #{tpu_custom_call.1} parent=1 // pred_check
      _
    $region35: #{tpu_custom_call.1} parent=1 // pred_check_branch
      %174 = sbr.rel (0) target = $region37
    $region36: #{tpu_custom_call.1} parent=1 // pred_region
      %175 = dma.done [#allocation4], 256
    $region37: #{tpu_custom_call.1} parent=1 // pred_fallthru
      _
    // Predicated region
    $region38: #{tpu_custom_call.1} parent=1 // pred_check
      _
    $region39: #{tpu_custom_call.1} parent=1 // pred_check_branch
      %177 = sbr.rel (0) target = $region41
    $region40: #{tpu_custom_call.1} parent=1 // pred_region
      _
    $region41: #{tpu_custom_call.1} parent=1 // pred_fallthru
      _
    // Predicated region
    $region42: #{tpu_custom_call.1} parent=1 // pred_check
      _
    $region43: #{tpu_custom_call.1} parent=1 // pred_check_branch
      %179 = sbr.rel (0) target = $region45
    $region44: #{tpu_custom_call.1} parent=1 // pred_region
      _
    $region45: #{tpu_custom_call.1} parent=1 // pred_fallthru
      _
    // Predicated region
    $region46: #{tpu_custom_call.1} parent=1 // pred_check
      _
    $region47: #{tpu_custom_call.1} parent=1 // pred_check_branch
      %181 = sbr.rel (0) target = $region49
    $region48: #{tpu_custom_call.1} parent=1 // pred_region
      _
    $region49: #{tpu_custom_call.1} parent=1 // pred_fallthru
      _
    %182 = vsyncpa [#allocation3], 1
    %183 = vsyncpa [#allocation6], 1
    %184 = vsyncpa [#allocation4], 1

</llo_original>
